<compile_context>
chip_gen: v7x
topology: tpu7x:2x2x1
jax: 0.10.0
libtpu: 0.0.40
codegen_flags: <defaults>
</compile_context>

<pallas_src>
import functools

import jax
import jax.numpy as jnp
from jax.experimental import pallas as pl
from jax.experimental.pallas import tpu as pltpu


_LN_EPS = 1e-5        # nn.LayerNorm default eps
_COS_EPS_SQ = 1e-16   # (F.cosine_similarity eps = 1e-8) ** 2


def _siamese_kernel(x1_ref, x2_ref, w_ref, p_ref, out_ref):
    w = w_ref[...]            # (E, D)   resident across all grid steps
    b = p_ref[0:1, :]         # (1, D)   Linear bias
    gamma = p_ref[1:2, :]     # (1, D)   LayerNorm weight
    beta = p_ref[2:3, :]      # (1, D)   LayerNorm bias

    def branch(x):
        # dense + relu (one MXU matmul per branch)
        h = jnp.dot(x, w, preferred_element_type=jnp.float32) + b
        h = jnp.maximum(h, 0.0)
        # unsqueeze(2) -> AdaptiveAvgPool1d(1) -> squeeze(2) averages over a
        # length-1 axis, i.e. identity -> no op emitted.
        mean = jnp.mean(h, axis=-1, keepdims=True)
        c = h - mean
        var = jnp.mean(c * c, axis=-1, keepdims=True)
        return c * jax.lax.rsqrt(var + _LN_EPS) * gamma + beta   # (tile_b, D)

    y1 = branch(x1_ref[...])
    y2 = branch(x2_ref[...])

    # Cosine similarity + sigmoid.
    dot = jnp.sum(y1 * y2, axis=-1)     # (tile_b,)
    s1 = jnp.sum(y1 * y1, axis=-1)
    s2 = jnp.sum(y2 * y2, axis=-1)
    cos = (dot
           * jax.lax.rsqrt(jnp.maximum(s1, _COS_EPS_SQ))
           * jax.lax.rsqrt(jnp.maximum(s2, _COS_EPS_SQ)))
    # Lane-dense store: output block is (1, tile_b), batch along the lane axis.
    out_ref[0, :] = jax.nn.sigmoid(cos)


def pack_params(b, gamma, beta):
    """Pack Linear bias / LN gamma / LN beta into one (3, D) operand.

    Done once at parameter-init time (single DMA per kernel call, no per-call
    jnp.stack dispatch).
    """
    return jnp.stack([b, gamma, beta], axis=0).astype(jnp.float32)


def _pick_row_tile(B):
    # Single block for small / non-aligned batches; 128-row-aligned tiles once
    # the batch is large so both x blocks (sublane axis) and the (1, tile)
    # output block (lane axis) satisfy the (8, 128) tiling constraint.
    if B % 128 == 0:
        for t in (512, 256, 128):
            if B % t == 0:
                return t
    return B


@jax.jit
def siamese_forward(x1, x2, w, params):
    """sigmoid(cos_sim(forward_once(x1), forward_once(x2))) -> shape (B,)."""
    B, E = x1.shape
    D = w.shape[1]
    tile_b = _pick_row_tile(B)
    grid = (B // tile_b,)

    out = pl.pallas_call(
        _siamese_kernel,
        out_shape=jax.ShapeDtypeStruct((1, B), jnp.float32),
        grid_spec=pltpu.PrefetchScalarGridSpec(
            num_scalar_prefetch=0,
            grid=grid,
            in_specs=[
                pl.BlockSpec((tile_b, E), lambda i: (i, 0)),   # x1 row tile
                pl.BlockSpec((tile_b, E), lambda i: (i, 0)),   # x2 row tile
                pl.BlockSpec((E, D), lambda i: (0, 0)),        # weight (resident)
                pl.BlockSpec((3, D), lambda i: (0, 0)),        # packed b/gamma/beta
            ],
            out_specs=pl.BlockSpec((1, tile_b), lambda i: (0, i)),
        ),
        compiler_params=pltpu.CompilerParams(
            # Row grid is independent across tiles: shards across both
            # TensorCores on v7x, harmless on single-TC v5e/v6e.
            dimension_semantics=("parallel",),
        ),
    )(x1, x2, w, params)
    return out.reshape(B)


if __name__ == "__main__":
    # Small shapes consistent with the module's forward.
    B = 8
    embedding_dim = 32
    output_dim = 32

    key = jax.random.PRNGKey(0)
    k1, k2, kw, kb = jax.random.split(key, 4)

    x1 = jax.random.normal(k1, (B, embedding_dim), dtype=jnp.float32)
    x2 = jax.random.normal(k2, (B, embedding_dim), dtype=jnp.float32)

    # Synthetic parameter init following nn.Linear / nn.LayerNorm shapes.
    bound = 1.0 / jnp.sqrt(embedding_dim)
    # PyTorch Linear stores weight as (output_dim, embedding_dim); keep the
    # transposed (E, D) layout so the kernel computes x @ w directly.
    w_torch = jax.random.uniform(
        kw, (output_dim, embedding_dim), minval=-bound, maxval=bound,
        dtype=jnp.float32,
    )
    w = w_torch.T                                            # (E, D)
    b = jax.random.uniform(
        kb, (output_dim,), minval=-bound, maxval=bound, dtype=jnp.float32
    )
    gamma = jnp.ones((output_dim,), dtype=jnp.float32)       # LN weight init
    beta = jnp.zeros((output_dim,), dtype=jnp.float32)       # LN bias init

    params = pack_params(b, gamma, beta)   # packed once, outside the call path

    out = siamese_forward(x1, x2, w, params)
    jax.block_until_ready(out)

    # Cross-check against a pure-JAX reference of the same math.
    def ref_once(x):
        h = jnp.maximum(x @ w + b, 0.0)
        mu = jnp.mean(h, axis=-1, keepdims=True)
        var = jnp.mean((h - mu) ** 2, axis=-1, keepdims=True)
        h = (h - mu) / jnp.sqrt(var + 1e-5)
        return h * gamma + beta

    y1r, y2r = ref_once(x1), ref_once(x2)
    cos_ref = jnp.sum(y1r * y2r, -1) / (
        jnp.maximum(jnp.linalg.norm(y1r, axis=-1), 1e-8)
        * jnp.maximum(jnp.linalg.norm(y2r, axis=-1), 1e-8)
    )
    ref = jax.nn.sigmoid(cos_ref)
    assert out.shape == (B,)
    assert jnp.allclose(out, ref, atol=1e-5, rtol=1e-5)

    print("KERNEL_OK")
</pallas_src>

<mosaic_0001>
module attributes {stable_mosaic.version = 11 : i64} {
  func.func @_siamese_kernel(%arg0: i32, %arg1: memref<8x32xf32, #tpu.memory_space<vmem>>, %arg2: memref<8x32xf32, #tpu.memory_space<vmem>>, %arg3: memref<32x32xf32, #tpu.memory_space<vmem>>, %arg4: memref<3x32xf32, #tpu.memory_space<vmem>>, %arg5: memref<1x8xf32, #tpu.memory_space<vmem>>) attributes {dimension_semantics = [#tpu.dimension_semantics<parallel>], iteration_bounds = array<i64: 1>, scalar_prefetch = 0 : i64, scratch_operands = 0 : i64, tpu.core_type = #tpu.core_type<tc>, window_params = [{transform_indices = @transform_0, window_bounds = array<i64: 8, 32>}, {transform_indices = @transform_1, window_bounds = array<i64: 8, 32>}, {pipeline_mode = #tpu.pipeline_mode<synchronous>, transform_indices = @transform_2, window_bounds = array<i64: 32, 32>}, {pipeline_mode = #tpu.pipeline_mode<synchronous>, transform_indices = @transform_3, window_bounds = array<i64: 3, 32>}, {transform_indices = @transform_4, window_bounds = array<i64: 1, 8>}]} {
    %c0 = arith.constant 0 : index
    %c0_0 = arith.constant 0 : index
    %0 = vector.load %arg3[%c0, %c0_0] : memref<32x32xf32, #tpu.memory_space<vmem>>, vector<32x32xf32>
    %c0_1 = arith.constant 0 : index
    %c0_2 = arith.constant 0 : index
    %1 = vector.load %arg4[%c0_1, %c0_2] : memref<3x32xf32, #tpu.memory_space<vmem>>, vector<1x32xf32>
    %c1 = arith.constant 1 : index
    %c0_3 = arith.constant 0 : index
    %2 = vector.load %arg4[%c1, %c0_3] : memref<3x32xf32, #tpu.memory_space<vmem>>, vector<1x32xf32>
    %c2 = arith.constant 2 : index
    %c0_4 = arith.constant 0 : index
    %3 = vector.load %arg4[%c2, %c0_4] : memref<3x32xf32, #tpu.memory_space<vmem>>, vector<1x32xf32>
    %c0_5 = arith.constant 0 : index
    %c0_6 = arith.constant 0 : index
    %4 = vector.load %arg1[%c0_5, %c0_6] : memref<8x32xf32, #tpu.memory_space<vmem>>, vector<8x32xf32>
    %cst = arith.constant dense<0.000000e+00> : vector<8x32xf32>
    %5 = tpu.matmul %4, %0, %cst {dimension_numbers = #tpu.dot_dimension_numbers<[1], [0], [0], [1], [0, 0, 1, 1], [], []>} : vector<8x32xf32>, vector<32x32xf32>, vector<8x32xf32> -> vector<8x32xf32>
    %6 = vector.broadcast %1 : vector<1x32xf32> to vector<8x32xf32>
    %7 = arith.addf %5, %6 : vector<8x32xf32>
    %cst_7 = arith.constant 0.000000e+00 : f32
    %8 = vector.broadcast %cst_7 : f32 to vector<8x32xf32>
    %9 = arith.maximumf %7, %8 : vector<8x32xf32>
    %cst_8 = arith.constant dense<0.000000e+00> : vector<8xf32>
    %10 = vector.multi_reduction <add>, %9, %cst_8 [1] : vector<8x32xf32> to vector<8xf32>
    %11 = vector.shape_cast %10 : vector<8xf32> to vector<8x1xf32>
    %cst_9 = arith.constant 3.200000e+01 : f32
    %12 = vector.broadcast %cst_9 : f32 to vector<8x1xf32>
    %13 = arith.divf %11, %12 : vector<8x1xf32>
    %14 = vector.broadcast %13 : vector<8x1xf32> to vector<8x32xf32>
    %15 = arith.subf %9, %14 : vector<8x32xf32>
    %16 = arith.mulf %15, %15 : vector<8x32xf32>
    %cst_10 = arith.constant dense<0.000000e+00> : vector<8xf32>
    %17 = vector.multi_reduction <add>, %16, %cst_10 [1] : vector<8x32xf32> to vector<8xf32>
    %18 = vector.shape_cast %17 : vector<8xf32> to vector<8x1xf32>
    %cst_11 = arith.constant 3.200000e+01 : f32
    %19 = vector.broadcast %cst_11 : f32 to vector<8x1xf32>
    %20 = arith.divf %18, %19 : vector<8x1xf32>
    %cst_12 = arith.constant 9.99999974E-6 : f32
    %21 = vector.broadcast %cst_12 : f32 to vector<8x1xf32>
    %22 = arith.addf %20, %21 : vector<8x1xf32>
    %23 = math.rsqrt %22 : vector<8x1xf32>
    %24 = vector.broadcast %23 : vector<8x1xf32> to vector<8x32xf32>
    %25 = arith.mulf %15, %24 : vector<8x32xf32>
    %26 = vector.broadcast %2 : vector<1x32xf32> to vector<8x32xf32>
    %27 = arith.mulf %25, %26 : vector<8x32xf32>
    %28 = vector.broadcast %3 : vector<1x32xf32> to vector<8x32xf32>
    %29 = arith.addf %27, %28 : vector<8x32xf32>
    %c0_13 = arith.constant 0 : index
    %c0_14 = arith.constant 0 : index
    %30 = vector.load %arg2[%c0_13, %c0_14] : memref<8x32xf32, #tpu.memory_space<vmem>>, vector<8x32xf32>
    %cst_15 = arith.constant dense<0.000000e+00> : vector<8x32xf32>
    %31 = tpu.matmul %30, %0, %cst_15 {dimension_numbers = #tpu.dot_dimension_numbers<[1], [0], [0], [1], [0, 0, 1, 1], [], []>} : vector<8x32xf32>, vector<32x32xf32>, vector<8x32xf32> -> vector<8x32xf32>
    %32 = vector.broadcast %1 : vector<1x32xf32> to vector<8x32xf32>
    %33 = arith.addf %31, %32 : vector<8x32xf32>
    %cst_16 = arith.constant 0.000000e+00 : f32
    %34 = vector.broadcast %cst_16 : f32 to vector<8x32xf32>
    %35 = arith.maximumf %33, %34 : vector<8x32xf32>
    %cst_17 = arith.constant dense<0.000000e+00> : vector<8xf32>
    %36 = vector.multi_reduction <add>, %35, %cst_17 [1] : vector<8x32xf32> to vector<8xf32>
    %37 = vector.shape_cast %36 : vector<8xf32> to vector<8x1xf32>
    %cst_18 = arith.constant 3.200000e+01 : f32
    %38 = vector.broadcast %cst_18 : f32 to vector<8x1xf32>
    %39 = arith.divf %37, %38 : vector<8x1xf32>
    %40 = vector.broadcast %39 : vector<8x1xf32> to vector<8x32xf32>
    %41 = arith.subf %35, %40 : vector<8x32xf32>
    %42 = arith.mulf %41, %41 : vector<8x32xf32>
    %cst_19 = arith.constant dense<0.000000e+00> : vector<8xf32>
    %43 = vector.multi_reduction <add>, %42, %cst_19 [1] : vector<8x32xf32> to vector<8xf32>
    %44 = vector.shape_cast %43 : vector<8xf32> to vector<8x1xf32>
    %cst_20 = arith.constant 3.200000e+01 : f32
    %45 = vector.broadcast %cst_20 : f32 to vector<8x1xf32>
    %46 = arith.divf %44, %45 : vector<8x1xf32>
    %cst_21 = arith.constant 9.99999974E-6 : f32
    %47 = vector.broadcast %cst_21 : f32 to vector<8x1xf32>
    %48 = arith.addf %46, %47 : vector<8x1xf32>
    %49 = math.rsqrt %48 : vector<8x1xf32>
    %50 = vector.broadcast %49 : vector<8x1xf32> to vector<8x32xf32>
    %51 = arith.mulf %41, %50 : vector<8x32xf32>
    %52 = vector.broadcast %2 : vector<1x32xf32> to vector<8x32xf32>
    %53 = arith.mulf %51, %52 : vector<8x32xf32>
    %54 = vector.broadcast %3 : vector<1x32xf32> to vector<8x32xf32>
    %55 = arith.addf %53, %54 : vector<8x32xf32>
    %56 = arith.mulf %29, %55 : vector<8x32xf32>
    %cst_22 = arith.constant dense<0.000000e+00> : vector<8xf32>
    %57 = vector.multi_reduction <add>, %56, %cst_22 [1] : vector<8x32xf32> to vector<8xf32>
    %58 = arith.mulf %29, %29 : vector<8x32xf32>
    %cst_23 = arith.constant dense<0.000000e+00> : vector<8xf32>
    %59 = vector.multi_reduction <add>, %58, %cst_23 [1] : vector<8x32xf32> to vector<8xf32>
    %60 = arith.mulf %55, %55 : vector<8x32xf32>
    %cst_24 = arith.constant dense<0.000000e+00> : vector<8xf32>
    %61 = vector.multi_reduction <add>, %60, %cst_24 [1] : vector<8x32xf32> to vector<8xf32>
    %cst_25 = arith.constant 1.000000e-16 : f32
    %62 = vector.broadcast %cst_25 : f32 to vector<8xf32>
    %63 = arith.maximumf %59, %62 : vector<8xf32>
    %64 = math.rsqrt %63 : vector<8xf32>
    %65 = arith.mulf %57, %64 : vector<8xf32>
    %cst_26 = arith.constant 1.000000e-16 : f32
    %66 = vector.broadcast %cst_26 : f32 to vector<8xf32>
    %67 = arith.maximumf %61, %66 : vector<8xf32>
    %68 = math.rsqrt %67 : vector<8xf32>
    %69 = arith.mulf %65, %68 : vector<8xf32>
    %70 = arith.negf %69 : vector<8xf32>
    %71 = math.exp %70 : vector<8xf32>
    %cst_27 = arith.constant 1.000000e+00 : f32
    %72 = vector.broadcast %cst_27 : f32 to vector<8xf32>
    %73 = arith.addf %72, %71 : vector<8xf32>
    %74 = arith.divf %72, %73 : vector<8xf32>
    %c0_28 = arith.constant 0 : index
    %c0_29 = arith.constant 0 : index
    %75 = vector.load %arg5[%c0_28, %c0_29] : memref<1x8xf32, #tpu.memory_space<vmem>>, vector<1x8xf32>
    %76 = vector.shape_cast %75 : vector<1x8xf32> to vector<8xf32>
    %77 = vector.shape_cast %74 : vector<8xf32> to vector<1x8xf32>
    tpu.vector_store %arg5[%c0_28, %c0_29], %77 {strides = array<i32>} : memref<1x8xf32, #tpu.memory_space<vmem>>, vector<1x8xf32>,
    return
  }
  func.func @transform_0(%arg0: i32) -> (i32, i32) {
    %c0_i32 = arith.constant 0 : i32
    %c0_i32_0 = arith.constant 0 : i32
    return %arg0, %c0_i32 : i32, i32
  }
  func.func @transform_1(%arg0: i32) -> (i32, i32) {
    %c0_i32 = arith.constant 0 : i32
    %c0_i32_0 = arith.constant 0 : i32
    return %arg0, %c0_i32 : i32, i32
  }
  func.func @transform_2(%arg0: i32) -> (i32, i32) {
    %c0_i32 = arith.constant 0 : i32
    %c0_i32_0 = arith.constant 0 : i32
    %c0_i32_1 = arith.constant 0 : i32
    return %c0_i32, %c0_i32_0 : i32, i32
  }
  func.func @transform_3(%arg0: i32) -> (i32, i32) {
    %c0_i32 = arith.constant 0 : i32
    %c0_i32_0 = arith.constant 0 : i32
    %c0_i32_1 = arith.constant 0 : i32
    return %c0_i32, %c0_i32_0 : i32, i32
  }
  func.func @transform_4(%arg0: i32) -> (i32, i32) {
    %c0_i32 = arith.constant 0 : i32
    %c0_i32_0 = arith.constant 0 : i32
    return %c0_i32, %arg0 : i32, i32
  }
}

</mosaic_0001>

<llo_original>
// kernel: siamese_forward.1
$region0: #{siamese_forward.1}
  #allocation0 [shape = 'u32[]', space=smem, size = 0x4, offset = 0x4, fixed_abs, tag = 'smem constant byte address 0x4 - core index']
  #allocation1 [shape = 'u32[144,128]{1,0:T(1,128)}', space=vmem, size = 0x12000, scoped, tag = 'internal scratch']
  %s0 = inlined_call_operand.hbm [shape: f32[8,32], index: 0, kind: input, shape index: {}]
  %s1 = inlined_call_operand.hbm [shape: f32[8,32], index: 1, kind: input, shape index: {}]
  %s2 = inlined_call_operand.hbm [shape: f32[32,32], index: 2, kind: input, shape index: {}]
  %s3 = inlined_call_operand.vmem [shape: f32[3,32], index: 3, kind: input, shape index: {}]
  %s4 = inlined_call_operand.hbm [shape: f32[1,8], index: 4, kind: output, shape index: {}]
  %s5 = sld [smem:[#allocation0]]
  $region38: #{siamese_forward.1} parent=0
    _
  %s7 = ssub.s32 1, %s5
  %s8 = scalar_select 0, %s7, %s5
  $region1: #{siamese_forward.1} parent=0
    #allocation2 [shape = 'u8[4096]{0}', space=vmem, size = 0x1000, scoped, tag = 'input window, operand 0, single buffered']
    #allocation3 [shape = 's32[1]{0}', space=sflag, size = 0x4, scoped, tag = 'scoped memory for siamese_forward.1']
    #allocation4 [shape = 's32[1]{0}', space=sflag, size = 0x4, scoped, tag = 'scoped memory for siamese_forward.1']
    #allocation5 [shape = 'u8[4096]{0}', space=vmem, size = 0x1000, scoped, tag = 'input window, operand 1, single buffered']
    #allocation6 [shape = 's32[1]{0}', space=sflag, size = 0x4, scoped, tag = 'scoped memory for siamese_forward.1']
    #allocation7 [shape = 'u8[16384]{0}', space=vmem, size = 0x4000, scoped, tag = 'input window, operand 2, single buffered']
    #allocation8 [shape = 'u8[512]{0}', space=vmem, size = 0x400, scoped, tag = 'output window, operand 0, single buffered']
    %9 = vsyncpa [#allocation3], 0
    %10 = vsyncpa [#allocation6], 0
    %11 = vsyncpa [#allocation4], 0
    // Predicated region
    $region2: #{siamese_forward.1} parent=1 // pred_check
      _
    $region3: #{siamese_forward.1} parent=1 // pred_check_branch
      %13 = sbr.rel (0) target = $region5
    $region4: #{siamese_forward.1} parent=1 // pred_region
      %s15 = ssub.s32 128, 128
      %16 = vsyncadd [#allocation3], %s15
      %s18 = sshll.u32 [#allocation2], 4
      %s19 = int_to_ptr.vmem [resolvable:$true] %s18
      %21 = dma.hbm_to_vmem [thread:$0]  %s0, 128, %s19, [#allocation3]
    $region5: #{siamese_forward.1} parent=1 // pred_fallthru
      _
    // Predicated region
    $region6: #{siamese_forward.1} parent=1 // pred_check
      _
    $region7: #{siamese_forward.1} parent=1 // pred_check_branch
      %23 = sbr.rel (0) target = $region9
    $region8: #{siamese_forward.1} parent=1 // pred_region
      %s25 = ssub.s32 128, 128
      %26 = vsyncadd [#allocation6], %s25
      %s28 = sshll.u32 [#allocation5], 4
      %s29 = int_to_ptr.vmem [resolvable:$true] %s28
      %31 = dma.hbm_to_vmem [thread:$0]  %s1, 128, %s29, [#allocation6]
    $region9: #{siamese_forward.1} parent=1 // pred_fallthru
      _
    // Predicated region
    $region10: #{siamese_forward.1} parent=1 // pred_check
      _
    $region11: #{siamese_forward.1} parent=1 // pred_check_branch
      %33 = sbr.rel (0) target = $region13
    $region12: #{siamese_forward.1} parent=1 // pred_region
      %s35 = ssub.s32 512, 512
      %36 = vsyncadd [#allocation6], %s35
      %s37 = sshll.u32 [#allocation7], 4
      %s38 = int_to_ptr.vmem [resolvable:$true] %s37
      %43 = dma.hbm_to_vmem [thread:$0]  %s2, 512, %s38, [#allocation6], 128, 128, 8
    $region13: #{siamese_forward.1} parent=1 // pred_fallthru
      _
    // Predicated region
    $region14: #{siamese_forward.1} parent=1 // pred_check
      _
    $region15: #{siamese_forward.1} parent=1 // pred_check_branch
      %45 = sbr.rel (0) target = $region17
    $region16: #{siamese_forward.1} parent=1 // pred_region
      _
    $region17: #{siamese_forward.1} parent=1 // pred_fallthru
      _
    // Predicated region
    $region18: #{siamese_forward.1} parent=1 // pred_check
      _
    $region19: #{siamese_forward.1} parent=1 // pred_check_branch
      %47 = sbr.rel (0) target = $region21
    $region20: #{siamese_forward.1} parent=1 // pred_region
      %48 = dma.done [#allocation3], 128
    $region21: #{siamese_forward.1} parent=1 // pred_fallthru
      _
    // Predicated region
    $region22: #{siamese_forward.1} parent=1 // pred_check
      _
    $region23: #{siamese_forward.1} parent=1 // pred_check_branch
      %50 = sbr.rel (0) target = $region25
    $region24: #{siamese_forward.1} parent=1 // pred_region
      %51 = dma.done [#allocation6], 128
    $region25: #{siamese_forward.1} parent=1 // pred_fallthru
      _
    // Predicated region
    $region26: #{siamese_forward.1} parent=1 // pred_check
      _
    $region27: #{siamese_forward.1} parent=1 // pred_check_branch
      %53 = sbr.rel (0) target = $region29
    $region28: #{siamese_forward.1} parent=1 // pred_region
      %54 = dma.done [#allocation6], 512
    $region29: #{siamese_forward.1} parent=1 // pred_fallthru
      _
    %v55 = vld [vmem:[#allocation7] sm:$0xff]
    %v56 = vld [vmem:[#allocation7 + $0x8] sm:$0xff]
    %v57 = vld [vmem:[#allocation7 + $0x10] sm:$0xff]
    %v58 = vld [vmem:[#allocation7 + $0x18] sm:$0xff]
    %v59 = vld [vmem:[%s3] sm:$0x1]
    %v60 = vld [vmem:[%s3 + $0x1] sm:$0x1]
    %v61 = vld [vmem:[%s3 + $0x2] sm:$0x1]
    %v62 = vld [vmem:[#allocation2] sm:$0xff]
    %v63 = vlaneseq
    %v64 = vshrl.u32 %v63, 7
    %v65 = vsub.s32 0, %v64
    %v66 = vrot.slane %v59, %v65
    %vm67 = vcmask 261120
    %v69 = vsel %vm67, %v62, 0
    %71 = vmatprep.subr.mxu0 0.0
    %72 = vmatpush1.msra.mxu0 %v55
    %73 = vmatprep.subr.mxu0 0.0
    %74 = vmatpush1.msra.mxu0 %v56
    %75 = vmatprep.subr.mxu0 0.0
    %76 = vmatpush1.msra.mxu0 %v57
    %77 = vmatprep.subr.mxu0 0.0
    %78 = vmatpush1.msra.mxu0 %v58
    %79 = vmatprep.subr.mxu0 0.0
    %80 = vmatpush1.msra.mxu0 0.0
    %81 = vmatprep.subr.mxu0 0.0
    %82 = vmatpush1.msra.mxu0 0.0
    %83 = vmatprep.subr.mxu0 0.0
    %84 = vmatpush1.msra.mxu0 0.0
    %85 = vmatprep.subr.mxu0 0.0
    %86 = vmatpush1.msra.mxu0 0.0
    %87 = vmatprep.subr.mxu0 0.0
    %88 = vmatpush1.msra.mxu0 0.0
    %89 = vmatprep.subr.mxu0 0.0
    %90 = vmatpush1.msra.mxu0 0.0
    %91 = vmatprep.subr.mxu0 0.0
    %92 = vmatpush1.msra.mxu0 0.0
    %93 = vmatprep.subr.mxu0 0.0
    %94 = vmatpush1.msra.mxu0 0.0
    %95 = vmatprep.subr.mxu0 0.0
    %96 = vmatpush1.msra.mxu0 0.0
    %97 = vmatprep.subr.mxu0 0.0
    %98 = vmatpush1.msra.mxu0 0.0
    %99 = vmatprep.subr.mxu0 0.0
    %100 = vmatpush1.msra.mxu0 0.0
    %101 = vmatprep.subr.mxu0 0.0
    %102 = vmatpush1.msra.mxu0 0.0
    %103 = vmatprep.subr.mxu0 0.0
    %104 = vmatpush1.msra.mxu0 0.0
    %105 = vmatprep.subr.mxu0 0.0
    %106 = vmatpush1.msra.mxu0 0.0
    %107 = vmatprep.subr.mxu0 0.0
    %108 = vmatpush1.msra.mxu0 0.0
    %109 = vmatprep.subr.mxu0 0.0
    %110 = vmatpush1.msra.mxu0 0.0
    %111 = vmatprep.subr.mxu0 0.0
    %112 = vmatpush1.msra.mxu0 0.0
    %113 = vmatprep.subr.mxu0 0.0
    %114 = vmatpush1.msra.mxu0 0.0
    %115 = vmatprep.subr.mxu0 0.0
    %116 = vmatpush1.msra.mxu0 0.0
    %117 = vmatprep.subr.mxu0 0.0
    %118 = vmatpush1.msra.mxu0 0.0
    %119 = vmatprep.subr.mxu0 0.0
    %120 = vmatpush1.msra.mxu0 0.0
    %121 = vmatprep.subr.mxu0 0.0
    %122 = vmatpush1.msra.mxu0 0.0
    %123 = vmatprep.subr.mxu0 0.0
    %124 = vmatpush1.msra.mxu0 0.0
    %125 = vmatprep.subr.mxu0 0.0
    %126 = vmatpush1.msra.mxu0 0.0
    %127 = vmatprep.subr.mxu0 0.0
    %128 = vmatpush1.msra.mxu0 0.0
    %129 = vmatprep.subr.mxu0 0.0
    %130 = vmatpush1.msra.mxu0 0.0
    %131 = vmatprep.subr.mxu0 0.0
    %132 = vmatpush1.msra.mxu0 0.0
    %133 = vmatprep.subr.mxu0 0.0
    %134 = vmatpush1.msra.mxu0 0.0
    %135 = vmatprep.mubr.f32.mxu0 0.0
    %136 = vmatmul.mubr.f32.gmra.mrb[0].mxu0 %v69
    %v137 = vpop.f32.mrb[0].mxu0
    %v138 = vadd.f32 %v66, %v137
    %v139 = vpop.f32.mrb[0].mxu0
    %140 = vdwg.mxu0
    %v141 = vmax.f32 %v138, 0.0
    %v142 = vsel %vm67, %v141, 0.0
    %143 = vadd.xlane.f32.xlu0 %v142
    %v144 = vpop.xlane.xlu0 %143
    %v145 = vrcp.pop 32.0
    %v146 = vmul.f32 %v144, %v145
    %v147 = vsub.f32 %v141, %v146
    %v148 = vmul.f32 %v147, %v147
    %v149 = vsel %vm67, %v148, 0.0
    %150 = vadd.xlane.f32.xlu0 %v149
    %v151 = vpop.xlane.xlu0 %150
    %v152 = vmul.f32 %v151, %v145
    %v153 = vadd.f32 %v152, 1e-05
    %v154 = vrsqrt.pop %v153
    %v155 = vmul.f32 %v147, %v154
    %v156 = vlaneseq
    %v157 = vshrl.u32 %v156, 7
    %v158 = vsub.s32 0, %v157
    %v159 = vrot.slane %v60, %v158
    %v160 = vmul.f32 %v155, %v159
    %v161 = vlaneseq
    %v162 = vshrl.u32 %v161, 7
    %v163 = vsub.s32 0, %v162
    %v164 = vrot.slane %v61, %v163
    %v165 = vadd.f32 %v160, %v164
    %v166 = vld [vmem:[#allocation5] sm:$0xff]
    %v168 = vsel %vm67, %v166, 0
    %170 = vmatprep.subr.mxu0 0.0
    %171 = vmatpush1.msra.mxu0 %v55
    %172 = vmatprep.subr.mxu0 0.0
    %173 = vmatpush1.msra.mxu0 %v56
    %174 = vmatprep.subr.mxu0 0.0
    %175 = vmatpush1.msra.mxu0 %v57
    %176 = vmatprep.subr.mxu0 0.0
    %177 = vmatpush1.msra.mxu0 %v58
    %178 = vmatprep.subr.mxu0 0.0
    %179 = vmatpush1.msra.mxu0 0.0
    %180 = vmatprep.subr.mxu0 0.0
    %181 = vmatpush1.msra.mxu0 0.0
    %182 = vmatprep.subr.mxu0 0.0
    %183 = vmatpush1.msra.mxu0 0.0
    %184 = vmatprep.subr.mxu0 0.0
    %185 = vmatpush1.msra.mxu0 0.0
    %186 = vmatprep.subr.mxu0 0.0
    %187 = vmatpush1.msra.mxu0 0.0
    %188 = vmatprep.subr.mxu0 0.0
    %189 = vmatpush1.msra.mxu0 0.0
    %190 = vmatprep.subr.mxu0 0.0
    %191 = vmatpush1.msra.mxu0 0.0
    %192 = vmatprep.subr.mxu0 0.0
    %193 = vmatpush1.msra.mxu0 0.0
    %194 = vmatprep.subr.mxu0 0.0
    %195 = vmatpush1.msra.mxu0 0.0
    %196 = vmatprep.subr.mxu0 0.0
    %197 = vmatpush1.msra.mxu0 0.0
    %198 = vmatprep.subr.mxu0 0.0
    %199 = vmatpush1.msra.mxu0 0.0
    %200 = vmatprep.subr.mxu0 0.0
    %201 = vmatpush1.msra.mxu0 0.0
    %202 = vmatprep.subr.mxu0 0.0
    %203 = vmatpush1.msra.mxu0 0.0
    %204 = vmatprep.subr.mxu0 0.0
    %205 = vmatpush1.msra.mxu0 0.0
    %206 = vmatprep.subr.mxu0 0.0
    %207 = vmatpush1.msra.mxu0 0.0
    %208 = vmatprep.subr.mxu0 0.0
    %209 = vmatpush1.msra.mxu0 0.0
    %210 = vmatprep.subr.mxu0 0.0
    %211 = vmatpush1.msra.mxu0 0.0
    %212 = vmatprep.subr.mxu0 0.0
    %213 = vmatpush1.msra.mxu0 0.0
    %214 = vmatprep.subr.mxu0 0.0
    %215 = vmatpush1.msra.mxu0 0.0
    %216 = vmatprep.subr.mxu0 0.0
    %217 = vmatpush1.msra.mxu0 0.0
    %218 = vmatprep.subr.mxu0 0.0
    %219 = vmatpush1.msra.mxu0 0.0
    %220 = vmatprep.subr.mxu0 0.0
    %221 = vmatpush1.msra.mxu0 0.0
    %222 = vmatprep.subr.mxu0 0.0
    %223 = vmatpush1.msra.mxu0 0.0
    %224 = vmatprep.subr.mxu0 0.0
    %225 = vmatpush1.msra.mxu0 0.0
    %226 = vmatprep.subr.mxu0 0.0
    %227 = vmatpush1.msra.mxu0 0.0
    %228 = vmatprep.subr.mxu0 0.0
    %229 = vmatpush1.msra.mxu0 0.0
    %230 = vmatprep.subr.mxu0 0.0
    %231 = vmatpush1.msra.mxu0 0.0
    %232 = vmatprep.subr.mxu0 0.0
    %233 = vmatpush1.msra.mxu0 0.0
    %234 = vmatprep.mubr.f32.mxu0 0.0
    %235 = vmatmul.mubr.f32.gmra.mrb[0].mxu0 %v168
    %v236 = vpop.f32.mrb[0].mxu0
    %v237 = vadd.f32 %v66, %v236
    %v238 = vpop.f32.mrb[0].mxu0
    %239 = vdwg.mxu0
    %v240 = vmax.f32 %v237, 0.0
    %v241 = vsel %vm67, %v240, 0.0
    %242 = vadd.xlane.f32.xlu0 %v241
    %v243 = vpop.xlane.xlu0 %242
    %v244 = vmul.f32 %v243, %v145
    %v245 = vsub.f32 %v240, %v244
    %v246 = vmul.f32 %v245, %v245
    %v247 = vsel %vm67, %v246, 0.0
    %248 = vadd.xlane.f32.xlu0 %v247
    %v249 = vpop.xlane.xlu0 %248
    %v250 = vmul.f32 %v249, %v145
    %v251 = vadd.f32 %v250, 1e-05
    %v252 = vrsqrt.pop %v251
    %v253 = vmul.f32 %v245, %v252
    %v254 = vmul.f32 %v253, %v159
    %v255 = vadd.f32 %v254, %v164
    %v256 = vmul.f32 %v165, %v255
    %v257 = vsel %vm67, %v256, 0.0
    %258 = vadd.xlane.f32.xlu0 %v257
    %v259 = vpop.xlane.xlu0 %258
    %v260 = vmul.f32 %v165, %v165
    %v261 = vsel %vm67, %v260, 0.0
    %262 = vadd.xlane.f32.xlu0 %v261
    %v263 = vpop.xlane.xlu0 %262
    %v264 = vmul.f32 %v255, %v255
    %v265 = vsel %vm67, %v264, 0.0
    %266 = vadd.xlane.f32.xlu0 %v265
    %v267 = vpop.xlane.xlu0 %266
    %v268 = vmax.f32 %v263, 1e-16
    %v269 = vrsqrt.pop %v268
    %v270 = vmul.f32 %v259, %v269
    %v271 = vmax.f32 %v267, 1e-16
    %v272 = vrsqrt.pop %v271
    %v273 = vmul.f32 %v270, %v272
    %v274 = vxor.u32 %v273, 2147483648
    %v275 = vmul.f32 %v274, 1.442695
    %v276 = vpow.pop %v275
    %v277 = vadd.f32 %v276, 1.0
    %v278 = vrcp.pop %v277
    %v279 = vmul.f32 1.0, %v278
    %v281 = vlaneseq
    %v282 = vand.u32 %v281, 127
    %v283 = vlaneseq
    %v284 = vshrl.u32 %v283, 7
    %v285 = vsub.s32 %v282, %v284
    %v286 = vrot.slane %v279, %v285
    %vm288 = vcmask 57344
    %289 = vst.msk [vmem:[#allocation8] sm:$0x1] %vm288, %v286
    // Predicated region
    $region30: #{siamese_forward.1} parent=1 // pred_check
      _
    $region31: #{siamese_forward.1} parent=1 // pred_check_branch
      %291 = sbr.rel (0) target = $region33
    $region32: #{siamese_forward.1} parent=1 // pred_region
      %s293 = ssub.s32 16, 16
      %294 = vsyncadd [#allocation4], %s293
      %s296 = sshll.u32 [#allocation8], 4
      %s297 = int_to_ptr.vmem [resolvable:$true] %s296
      %299 = dma.vmem_to_hbm [thread:$0]  %s297, 16, %s4, [#allocation4]
    $region33: #{siamese_forward.1} parent=1 // pred_fallthru
      _
    // Predicated region
    $region34: #{siamese_forward.1} parent=1 // pred_check
      _
    $region35: #{siamese_forward.1} parent=1 // pred_check_branch
      %301 = sbr.rel (0) target = $region37
    $region36: #{siamese_forward.1} parent=1 // pred_region
      %302 = dma.done [#allocation4], 16
    $region37: #{siamese_forward.1} parent=1 // pred_fallthru
      _
    %303 = vsyncpa [#allocation3], 1
    %304 = vsyncpa [#allocation6], 1
    %305 = vsyncpa [#allocation4], 1

</llo_original>
